<compile_context>
chip_gen: v5e
topology: v5e:2x2
jax: 0.10.0
libtpu: 0.0.40
codegen_flags: <defaults>
</compile_context>

<pallas_src>
import math
import functools

import jax
import jax.numpy as jnp
from jax.experimental import pallas as pl
from jax.experimental.pallas import tpu as pltpu

_INV_SQRT2 = 1.0 / math.sqrt(2.0)


def _residual_block_kernel(
    x_ref,         # (1, C, Lt)   current (batch, L-tile) slab of x (NCL)
    st_ref,        # (1, Dc, Lt)  current (batch, L-tile) slab of ST_info
    d_ref,         # (1, C, 1)    precomputed diffusion projection row for this batch
    wmg_ref,       # (C, C)   mid_projection   -> gate half
    wmf_ref,       # (C, C)   mid_projection   -> filter half
    wsg_ref,       # (C, Dc)  ST_cond_projection -> gate half
    wsf_ref,       # (C, Dc)  ST_cond_projection -> filter half
    wor_ref,       # (C, C)   output_projection -> residual half
    wos_ref,       # (C, C)   output_projection -> skip half
    bg_ref,        # (C, 1)   combined gate bias  (b_mid[:C] + b_st[:C])
    bf_ref,        # (C, 1)   combined filter bias (b_mid[C:] + b_st[C:])
    br_ref,        # (C, 1)   residual bias (b_out[:C])
    bs_ref,        # (C, 1)   skip bias     (b_out[C:])
    res_out_ref,   # (1, C, Lt)
    skip_out_ref,  # (1, C, Lt)
):
    x = x_ref[0].astype(jnp.float32)        # (C, Lt)
    st = st_ref[0].astype(jnp.float32)      # (Dc, Lt)

    # y = x + diffusion_projection(diffusion_emb).unsqueeze(-1)  (broadcast over L)
    y = x + d_ref[0].astype(jnp.float32)    # (C, Lt)

    # Matmul operand dtype (f32, or bf16 if the wrapper pre-cast the weights).
    mdt = wmg_ref.dtype
    y_m = y.astype(mdt)
    st_m = st.astype(mdt)

    # Pre-split weights -> gate/filter come out as separate lane-aligned matmuls,
    # no post-matmul chunk along a non-128-aligned channel axis.
    gate = (jnp.dot(wmg_ref[...], y_m, preferred_element_type=jnp.float32)
            + jnp.dot(wsg_ref[...], st_m, preferred_element_type=jnp.float32)
            + bg_ref[...])                                            # (C, Lt)
    filt = (jnp.dot(wmf_ref[...], y_m, preferred_element_type=jnp.float32)
            + jnp.dot(wsf_ref[...], st_m, preferred_element_type=jnp.float32)
            + bf_ref[...])                                            # (C, Lt)

    z = jax.nn.sigmoid(gate) * jnp.tanh(filt)                         # (C, Lt), f32
    z_m = z.astype(mdt)

    residual = (jnp.dot(wor_ref[...], z_m, preferred_element_type=jnp.float32)
                + br_ref[...])                                        # (C, Lt)
    skip = (jnp.dot(wos_ref[...], z_m, preferred_element_type=jnp.float32)
            + bs_ref[...])                                            # (C, Lt)

    res_out_ref[0] = ((x + residual) * _INV_SQRT2).astype(res_out_ref.dtype)
    skip_out_ref[0] = skip.astype(skip_out_ref.dtype)


def _choose_l_tile(L):
    """Largest lane-dense (multiple-of-128, <=512) tile dividing L, else full L."""
    if L % 128 == 0:
        for t in (512, 384, 256, 128):
            if L % t == 0:
                return t
    return L


@functools.partial(jax.jit, static_argnames=("matmul_dtype",))
def residual_block_forward(x_ncl, st_ncl, diffusion_emb, params, matmul_dtype=None):
    """x_ncl: (B, C, L)   st_ncl: (B, cond_dim, L)   diffusion_emb: (B, Dd).

    Returns ((x + residual) / sqrt(2), skip), both (B, C, L), matching the PyTorch
    ResidualBlock.forward. `matmul_dtype=jnp.bfloat16` feeds the MXU bf16 operands
    (f32 accumulation) for v6e/v7x; default keeps full f32.
    """
    B, C, L = x_ncl.shape
    Dc = st_ncl.shape[1]

    # --- wrapper-side precompute (tiny vs. the main O(B*C*L*C) work) ---------
    # diffusion_projection for all batches at once: (B, Dd) @ (Dd, C) + bias.
    d = (diffusion_emb.astype(jnp.float32) @ params["w_diff"].astype(jnp.float32).T
         + params["b_diff"].astype(jnp.float32))                      # (B, C)
    d = d.reshape(B, C, 1)

    # Pre-split the 2C-wide projection weights into lane-aligned halves.
    w_mid, w_st, w_out = params["w_mid"], params["w_st"], params["w_out"]
    wmg, wmf = w_mid[:C], w_mid[C:]          # (C, C) each
    wsg, wsf = w_st[:C], w_st[C:]            # (C, Dc) each
    wor, wos = w_out[:C], w_out[C:]          # (C, C) each
    if matmul_dtype is not None:
        wmg, wmf = wmg.astype(matmul_dtype), wmf.astype(matmul_dtype)
        wsg, wsf = wsg.astype(matmul_dtype), wsf.astype(matmul_dtype)
        wor, wos = wor.astype(matmul_dtype), wos.astype(matmul_dtype)

    # Combined biases (mid + ST biases add before the nonlinearity).
    bg = (params["b_mid"][:C] + params["b_st"][:C]).astype(jnp.float32).reshape(C, 1)
    bf = (params["b_mid"][C:] + params["b_st"][C:]).astype(jnp.float32).reshape(C, 1)
    br = params["b_out"][:C].astype(jnp.float32).reshape(C, 1)
    bs = params["b_out"][C:].astype(jnp.float32).reshape(C, 1)

    # --- grid / block layout -------------------------------------------------
    Lt = _choose_l_tile(L)
    nL = L // Lt

    const_spec = lambda shape: pl.BlockSpec(shape, lambda b, l: (0,) * len(shape))

    grid_spec = pltpu.PrefetchScalarGridSpec(
        num_scalar_prefetch=0,
        grid=(B, nL),
        in_specs=[
            pl.BlockSpec((1, C, Lt), lambda b, l: (b, 0, l)),    # x (NCL)
            pl.BlockSpec((1, Dc, Lt), lambda b, l: (b, 0, l)),   # ST_info (NCL)
            pl.BlockSpec((1, C, 1), lambda b, l: (b, 0, 0)),     # diffusion row
            const_spec((C, C)), const_spec((C, C)),              # mid gate/filter
            const_spec((C, Dc)), const_spec((C, Dc)),            # ST gate/filter
            const_spec((C, C)), const_spec((C, C)),              # out residual/skip
            const_spec((C, 1)), const_spec((C, 1)),              # gate/filter bias
            const_spec((C, 1)), const_spec((C, 1)),              # residual/skip bias
        ],
        out_specs=[
            pl.BlockSpec((1, C, Lt), lambda b, l: (b, 0, l)),    # residual output
            pl.BlockSpec((1, C, Lt), lambda b, l: (b, 0, l)),    # skip output
        ],
    )

    res, skip = pl.pallas_call(
        _residual_block_kernel,
        out_shape=(
            jax.ShapeDtypeStruct((B, C, L), x_ncl.dtype),
            jax.ShapeDtypeStruct((B, C, L), x_ncl.dtype),
        ),
        grid_spec=grid_spec,
        compiler_params=pltpu.CompilerParams(
            dimension_semantics=("parallel", "parallel")),
    )(x_ncl, st_ncl, d, wmg, wmf, wsg, wsf, wor, wos, bg, bf, br, bs)

    return res, skip


def _reference_forward(x_ncl, st_ncl, diffusion_emb, params):
    """Pure-JAX reference matching the PyTorch forward (NCL layout)."""
    B, C, L = x_ncl.shape
    d = diffusion_emb @ params["w_diff"].T + params["b_diff"]        # (B, C)
    y = x_ncl + d[:, :, None]                                        # (B, C, L)
    y = jnp.einsum("oc,bcl->bol", params["w_mid"], y) + params["b_mid"][None, :, None]
    st = jnp.einsum("oc,bcl->bol", params["w_st"], st_ncl) + params["b_st"][None, :, None]
    y = y + st
    gate, filt = y[:, :C, :], y[:, C:, :]
    z = jax.nn.sigmoid(gate) * jnp.tanh(filt)
    y = jnp.einsum("oc,bcl->bol", params["w_out"], z) + params["b_out"][None, :, None]
    residual, skip = y[:, :C, :], y[:, C:, :]
    return (x_ncl + residual) / math.sqrt(2.0), skip


def init_params(key, cond_dim, channels, diffusion_embedding_dim):
    C = channels
    ks = jax.random.split(key, 8)

    def kaiming(k, shape, fan_in):
        return jax.random.normal(k, shape, jnp.float32) * math.sqrt(2.0 / fan_in)

    return {
        # nn.Linear(diffusion_embedding_dim, channels): weight (out, in)
        "w_diff": jax.random.normal(ks[0], (C, diffusion_embedding_dim), jnp.float32)
                  / math.sqrt(diffusion_embedding_dim),
        "b_diff": jax.random.normal(ks[1], (C,), jnp.float32) * 0.01,
        # Conv1d(channels, 2C, 1): weight (out, in) after squeezing kernel dim
        "w_mid": kaiming(ks[2], (2 * C, C), C),
        "b_mid": jax.random.normal(ks[3], (2 * C,), jnp.float32) * 0.01,
        # Conv1d(cond_dim, 2C, 1)
        "w_st": kaiming(ks[4], (2 * C, cond_dim), cond_dim),
        "b_st": jax.random.normal(ks[5], (2 * C,), jnp.float32) * 0.01,
        # Conv1d(channels, 2C, 1)
        "w_out": kaiming(ks[6], (2 * C, C), C),
        "b_out": jax.random.normal(ks[7], (2 * C,), jnp.float32) * 0.01,
    }


if __name__ == "__main__":
    # Small shapes consistent with the module's forward.
    B = 2
    channels = 4
    emb_dim = 16          # length L of the 1x1 convs
    cond_dim = 8
    diffusion_embedding_dim = 32

    key = jax.random.PRNGKey(0)
    kx, kst, kd, kh, kp = jax.random.split(key, 5)

    x = jax.random.normal(kx, (B, channels, emb_dim), jnp.float32)
    ST_info = jax.random.normal(kst, (B, cond_dim, emb_dim), jnp.float32)
    diffusion_emb = jax.random.normal(kd, (B, diffusion_embedding_dim), jnp.float32)
    hist_info = jax.random.normal(kh, (B, 1, 24), jnp.float32)  # unused in forward (matches PyTorch)

    params = init_params(kp, cond_dim, channels, diffusion_embedding_dim)

    res, skip = residual_block_forward(x, ST_info, diffusion_emb, params)
    jax.block_until_ready((res, skip))

    res_ref, skip_ref = _reference_forward(x, ST_info, diffusion_emb, params)
    assert res.shape == (B, channels, emb_dim) and skip.shape == (B, channels, emb_dim)
    assert jnp.allclose(res, res_ref, atol=1e-5, rtol=1e-5)
    assert jnp.allclose(skip, skip_ref, atol=1e-5, rtol=1e-5)

    print("KERNEL_OK")
</pallas_src>

<mosaic_0001>
module attributes {stable_mosaic.version = 11 : i64} {
  func.func @_residual_block_kernel(%arg0: i32, %arg1: i32, %arg2: memref<1x4x16xf32, #tpu.memory_space<vmem>>, %arg3: memref<1x8x16xf32, #tpu.memory_space<vmem>>, %arg4: memref<1x4x1xf32, #tpu.memory_space<vmem>>, %arg5: memref<4x4xf32, #tpu.memory_space<vmem>>, %arg6: memref<4x4xf32, #tpu.memory_space<vmem>>, %arg7: memref<4x8xf32, #tpu.memory_space<vmem>>, %arg8: memref<4x8xf32, #tpu.memory_space<vmem>>, %arg9: memref<4x4xf32, #tpu.memory_space<vmem>>, %arg10: memref<4x4xf32, #tpu.memory_space<vmem>>, %arg11: memref<4x1xf32, #tpu.memory_space<vmem>>, %arg12: memref<4x1xf32, #tpu.memory_space<vmem>>, %arg13: memref<4x1xf32, #tpu.memory_space<vmem>>, %arg14: memref<4x1xf32, #tpu.memory_space<vmem>>, %arg15: memref<1x4x16xf32, #tpu.memory_space<vmem>>, %arg16: memref<1x4x16xf32, #tpu.memory_space<vmem>>) attributes {dimension_semantics = [#tpu.dimension_semantics<parallel>, #tpu.dimension_semantics<parallel>], iteration_bounds = array<i64: 2, 1>, scalar_prefetch = 0 : i64, scratch_operands = 0 : i64, tpu.core_type = #tpu.core_type<tc>, window_params = [{transform_indices = @transform_0, window_bounds = array<i64: 1, 4, 16>}, {transform_indices = @transform_1, window_bounds = array<i64: 1, 8, 16>}, {transform_indices = @transform_2, window_bounds = array<i64: 1, 4, 1>}, {pipeline_mode = #tpu.pipeline_mode<synchronous>, transform_indices = @transform_3, window_bounds = array<i64: 4, 4>}, {pipeline_mode = #tpu.pipeline_mode<synchronous>, transform_indices = @transform_4, window_bounds = array<i64: 4, 4>}, {pipeline_mode = #tpu.pipeline_mode<synchronous>, transform_indices = @transform_5, window_bounds = array<i64: 4, 8>}, {pipeline_mode = #tpu.pipeline_mode<synchronous>, transform_indices = @transform_6, window_bounds = array<i64: 4, 8>}, {pipeline_mode = #tpu.pipeline_mode<synchronous>, transform_indices = @transform_7, window_bounds = array<i64: 4, 4>}, {pipeline_mode = #tpu.pipeline_mode<synchronous>, transform_indices = @transform_8, window_bounds = array<i64: 4, 4>}, {pipeline_mode = #tpu.pipeline_mode<synchronous>, transform_indices = @transform_9, window_bounds = array<i64: 4, 1>}, {pipeline_mode = #tpu.pipeline_mode<synchronous>, transform_indices = @transform_10, window_bounds = array<i64: 4, 1>}, {pipeline_mode = #tpu.pipeline_mode<synchronous>, transform_indices = @transform_11, window_bounds = array<i64: 4, 1>}, {pipeline_mode = #tpu.pipeline_mode<synchronous>, transform_indices = @transform_12, window_bounds = array<i64: 4, 1>}, {transform_indices = @transform_13, window_bounds = array<i64: 1, 4, 16>}, {transform_indices = @transform_14, window_bounds = array<i64: 1, 4, 16>}]} {
    %c0 = arith.constant 0 : index
    %c0_0 = arith.constant 0 : index
    %c0_1 = arith.constant 0 : index
    %0 = vector.load %arg2[%c0, %c0_0, %c0_1] : memref<1x4x16xf32, #tpu.memory_space<vmem>>, vector<1x4x16xf32>
    %1 = vector.shape_cast %0 : vector<1x4x16xf32> to vector<4x16xf32>
    %c0_2 = arith.constant 0 : index
    %c0_3 = arith.constant 0 : index
    %c0_4 = arith.constant 0 : index
    %2 = vector.load %arg3[%c0_2, %c0_3, %c0_4] : memref<1x8x16xf32, #tpu.memory_space<vmem>>, vector<1x8x16xf32>
    %3 = vector.shape_cast %2 : vector<1x8x16xf32> to vector<8x16xf32>
    %c0_5 = arith.constant 0 : index
    %c0_6 = arith.constant 0 : index
    %c0_7 = arith.constant 0 : index
    %4 = vector.load %arg4[%c0_5, %c0_6, %c0_7] : memref<1x4x1xf32, #tpu.memory_space<vmem>>, vector<1x4x1xf32>
    %5 = vector.shape_cast %4 : vector<1x4x1xf32> to vector<4x1xf32>
    %6 = vector.broadcast %5 : vector<4x1xf32> to vector<4x16xf32>
    %7 = arith.addf %1, %6 : vector<4x16xf32>
    %c0_8 = arith.constant 0 : index
    %c0_9 = arith.constant 0 : index
    %8 = vector.load %arg5[%c0_8, %c0_9] : memref<4x4xf32, #tpu.memory_space<vmem>>, vector<4x4xf32>
    %cst = arith.constant dense<0.000000e+00> : vector<4x16xf32>
    %9 = tpu.matmul %8, %7, %cst {dimension_numbers = #tpu.dot_dimension_numbers<[1], [0], [0], [1], [0, 0, 1, 1], [], []>} : vector<4x4xf32>, vector<4x16xf32>, vector<4x16xf32> -> vector<4x16xf32>
    %c0_10 = arith.constant 0 : index
    %c0_11 = arith.constant 0 : index
    %10 = vector.load %arg7[%c0_10, %c0_11] : memref<4x8xf32, #tpu.memory_space<vmem>>, vector<4x8xf32>
    %cst_12 = arith.constant dense<0.000000e+00> : vector<4x16xf32>
    %11 = tpu.matmul %10, %3, %cst_12 {dimension_numbers = #tpu.dot_dimension_numbers<[1], [0], [0], [1], [0, 0, 1, 1], [], []>} : vector<4x8xf32>, vector<8x16xf32>, vector<4x16xf32> -> vector<4x16xf32>
    %12 = arith.addf %9, %11 : vector<4x16xf32>
    %c0_13 = arith.constant 0 : index
    %c0_14 = arith.constant 0 : index
    %13 = vector.load %arg11[%c0_13, %c0_14] : memref<4x1xf32, #tpu.memory_space<vmem>>, vector<4x1xf32>
    %14 = vector.broadcast %13 : vector<4x1xf32> to vector<4x16xf32>
    %15 = arith.addf %12, %14 : vector<4x16xf32>
    %c0_15 = arith.constant 0 : index
    %c0_16 = arith.constant 0 : index
    %16 = vector.load %arg6[%c0_15, %c0_16] : memref<4x4xf32, #tpu.memory_space<vmem>>, vector<4x4xf32>
    %cst_17 = arith.constant dense<0.000000e+00> : vector<4x16xf32>
    %17 = tpu.matmul %16, %7, %cst_17 {dimension_numbers = #tpu.dot_dimension_numbers<[1], [0], [0], [1], [0, 0, 1, 1], [], []>} : vector<4x4xf32>, vector<4x16xf32>, vector<4x16xf32> -> vector<4x16xf32>
    %c0_18 = arith.constant 0 : index
    %c0_19 = arith.constant 0 : index
    %18 = vector.load %arg8[%c0_18, %c0_19] : memref<4x8xf32, #tpu.memory_space<vmem>>, vector<4x8xf32>
    %cst_20 = arith.constant dense<0.000000e+00> : vector<4x16xf32>
    %19 = tpu.matmul %18, %3, %cst_20 {dimension_numbers = #tpu.dot_dimension_numbers<[1], [0], [0], [1], [0, 0, 1, 1], [], []>} : vector<4x8xf32>, vector<8x16xf32>, vector<4x16xf32> -> vector<4x16xf32>
    %20 = arith.addf %17, %19 : vector<4x16xf32>
    %c0_21 = arith.constant 0 : index
    %c0_22 = arith.constant 0 : index
    %21 = vector.load %arg12[%c0_21, %c0_22] : memref<4x1xf32, #tpu.memory_space<vmem>>, vector<4x1xf32>
    %22 = vector.broadcast %21 : vector<4x1xf32> to vector<4x16xf32>
    %23 = arith.addf %20, %22 : vector<4x16xf32>
    %24 = arith.negf %15 : vector<4x16xf32>
    %25 = math.exp %24 : vector<4x16xf32>
    %cst_23 = arith.constant 1.000000e+00 : f32
    %26 = vector.broadcast %cst_23 : f32 to vector<4x16xf32>
    %27 = arith.addf %26, %25 : vector<4x16xf32>
    %28 = arith.divf %26, %27 : vector<4x16xf32>
    %29 = math.tanh %23 : vector<4x16xf32>
    %30 = arith.mulf %28, %29 : vector<4x16xf32>
    %c0_24 = arith.constant 0 : index
    %c0_25 = arith.constant 0 : index
    %31 = vector.load %arg9[%c0_24, %c0_25] : memref<4x4xf32, #tpu.memory_space<vmem>>, vector<4x4xf32>
    %cst_26 = arith.constant dense<0.000000e+00> : vector<4x16xf32>
    %32 = tpu.matmul %31, %30, %cst_26 {dimension_numbers = #tpu.dot_dimension_numbers<[1], [0], [0], [1], [0, 0, 1, 1], [], []>} : vector<4x4xf32>, vector<4x16xf32>, vector<4x16xf32> -> vector<4x16xf32>
    %c0_27 = arith.constant 0 : index
    %c0_28 = arith.constant 0 : index
    %33 = vector.load %arg13[%c0_27, %c0_28] : memref<4x1xf32, #tpu.memory_space<vmem>>, vector<4x1xf32>
    %34 = vector.broadcast %33 : vector<4x1xf32> to vector<4x16xf32>
    %35 = arith.addf %32, %34 : vector<4x16xf32>
    %c0_29 = arith.constant 0 : index
    %c0_30 = arith.constant 0 : index
    %36 = vector.load %arg10[%c0_29, %c0_30] : memref<4x4xf32, #tpu.memory_space<vmem>>, vector<4x4xf32>
    %cst_31 = arith.constant dense<0.000000e+00> : vector<4x16xf32>
    %37 = tpu.matmul %36, %30, %cst_31 {dimension_numbers = #tpu.dot_dimension_numbers<[1], [0], [0], [1], [0, 0, 1, 1], [], []>} : vector<4x4xf32>, vector<4x16xf32>, vector<4x16xf32> -> vector<4x16xf32>
    %c0_32 = arith.constant 0 : index
    %c0_33 = arith.constant 0 : index
    %38 = vector.load %arg14[%c0_32, %c0_33] : memref<4x1xf32, #tpu.memory_space<vmem>>, vector<4x1xf32>
    %39 = vector.broadcast %38 : vector<4x1xf32> to vector<4x16xf32>
    %40 = arith.addf %37, %39 : vector<4x16xf32>
    %41 = arith.addf %1, %35 : vector<4x16xf32>
    %cst_34 = arith.constant 0.707106769 : f32
    %42 = vector.broadcast %cst_34 : f32 to vector<4x16xf32>
    %43 = arith.mulf %41, %42 : vector<4x16xf32>
    %c0_35 = arith.constant 0 : index
    %c0_36 = arith.constant 0 : index
    %c0_37 = arith.constant 0 : index
    %44 = vector.load %arg15[%c0_35, %c0_36, %c0_37] : memref<1x4x16xf32, #tpu.memory_space<vmem>>, vector<1x4x16xf32>
    %45 = vector.shape_cast %44 : vector<1x4x16xf32> to vector<4x16xf32>
    %46 = vector.shape_cast %43 : vector<4x16xf32> to vector<1x4x16xf32>
    tpu.vector_store %arg15[%c0_35, %c0_36, %c0_37], %46 {strides = array<i32>} : memref<1x4x16xf32, #tpu.memory_space<vmem>>, vector<1x4x16xf32>,
    %c0_38 = arith.constant 0 : index
    %c0_39 = arith.constant 0 : index
    %c0_40 = arith.constant 0 : index
    %47 = vector.load %arg16[%c0_38, %c0_39, %c0_40] : memref<1x4x16xf32, #tpu.memory_space<vmem>>, vector<1x4x16xf32>
    %48 = vector.shape_cast %47 : vector<1x4x16xf32> to vector<4x16xf32>
    %49 = vector.shape_cast %40 : vector<4x16xf32> to vector<1x4x16xf32>
    tpu.vector_store %arg16[%c0_38, %c0_39, %c0_40], %49 {strides = array<i32>} : memref<1x4x16xf32, #tpu.memory_space<vmem>>, vector<1x4x16xf32>,
    return
  }
  func.func @transform_0(%arg0: i32, %arg1: i32) -> (i32, i32, i32) {
    %c0_i32 = arith.constant 0 : i32
    %c0_i32_0 = arith.constant 0 : i32
    return %arg0, %c0_i32, %arg1 : i32, i32, i32
  }
  func.func @transform_1(%arg0: i32, %arg1: i32) -> (i32, i32, i32) {
    %c0_i32 = arith.constant 0 : i32
    %c0_i32_0 = arith.constant 0 : i32
    return %arg0, %c0_i32, %arg1 : i32, i32, i32
  }
  func.func @transform_2(%arg0: i32, %arg1: i32) -> (i32, i32, i32) {
    %c0_i32 = arith.constant 0 : i32
    %c0_i32_0 = arith.constant 0 : i32
    %c0_i32_1 = arith.constant 0 : i32
    return %arg0, %c0_i32, %c0_i32_0 : i32, i32, i32
  }
  func.func @transform_3(%arg0: i32, %arg1: i32) -> (i32, i32) {
    %c0_i32 = arith.constant 0 : i32
    %c0_i32_0 = arith.constant 0 : i32
    %c0_i32_1 = arith.constant 0 : i32
    return %c0_i32, %c0_i32_0 : i32, i32
  }
  func.func @transform_4(%arg0: i32, %arg1: i32) -> (i32, i32) {
    %c0_i32 = arith.constant 0 : i32
    %c0_i32_0 = arith.constant 0 : i32
    %c0_i32_1 = arith.constant 0 : i32
    return %c0_i32, %c0_i32_0 : i32, i32
  }
  func.func @transform_5(%arg0: i32, %arg1: i32) -> (i32, i32) {
    %c0_i32 = arith.constant 0 : i32
    %c0_i32_0 = arith.constant 0 : i32
    %c0_i32_1 = arith.constant 0 : i32
    return %c0_i32, %c0_i32_0 : i32, i32
  }
  func.func @transform_6(%arg0: i32, %arg1: i32) -> (i32, i32) {
    %c0_i32 = arith.constant 0 : i32
    %c0_i32_0 = arith.constant 0 : i32
    %c0_i32_1 = arith.constant 0 : i32
    return %c0_i32, %c0_i32_0 : i32, i32
  }
  func.func @transform_7(%arg0: i32, %arg1: i32) -> (i32, i32) {
    %c0_i32 = arith.constant 0 : i32
    %c0_i32_0 = arith.constant 0 : i32
    %c0_i32_1 = arith.constant 0 : i32
    return %c0_i32, %c0_i32_0 : i32, i32
  }
  func.func @transform_8(%arg0: i32, %arg1: i32) -> (i32, i32) {
    %c0_i32 = arith.constant 0 : i32
    %c0_i32_0 = arith.constant 0 : i32
    %c0_i32_1 = arith.constant 0 : i32
    return %c0_i32, %c0_i32_0 : i32, i32
  }
  func.func @transform_9(%arg0: i32, %arg1: i32) -> (i32, i32) {
    %c0_i32 = arith.constant 0 : i32
    %c0_i32_0 = arith.constant 0 : i32
    %c0_i32_1 = arith.constant 0 : i32
    return %c0_i32, %c0_i32_0 : i32, i32
  }
  func.func @transform_10(%arg0: i32, %arg1: i32) -> (i32, i32) {
    %c0_i32 = arith.constant 0 : i32
    %c0_i32_0 = arith.constant 0 : i32
    %c0_i32_1 = arith.constant 0 : i32
    return %c0_i32, %c0_i32_0 : i32, i32
  }
  func.func @transform_11(%arg0: i32, %arg1: i32) -> (i32, i32) {
    %c0_i32 = arith.constant 0 : i32
    %c0_i32_0 = arith.constant 0 : i32
    %c0_i32_1 = arith.constant 0 : i32
    return %c0_i32, %c0_i32_0 : i32, i32
  }
  func.func @transform_12(%arg0: i32, %arg1: i32) -> (i32, i32) {
    %c0_i32 = arith.constant 0 : i32
    %c0_i32_0 = arith.constant 0 : i32
    %c0_i32_1 = arith.constant 0 : i32
    return %c0_i32, %c0_i32_0 : i32, i32
  }
  func.func @transform_13(%arg0: i32, %arg1: i32) -> (i32, i32, i32) {
    %c0_i32 = arith.constant 0 : i32
    %c0_i32_0 = arith.constant 0 : i32
    return %arg0, %c0_i32, %arg1 : i32, i32, i32
  }
  func.func @transform_14(%arg0: i32, %arg1: i32) -> (i32, i32, i32) {
    %c0_i32 = arith.constant 0 : i32
    %c0_i32_0 = arith.constant 0 : i32
    return %arg0, %c0_i32, %arg1 : i32, i32, i32
  }
}

</mosaic_0001>

<llo_original>
// kernel: residual_block_forward.1
$region0: #{residual_block_forward.1}
  #allocation0 [shape = 'u32[]', space=smem, size = 0x4, offset = 0x4, fixed_abs, tag = 'smem constant byte address 0x4 - core index']
  #allocation1 [shape = 'u32[72,128]{1,0:T(1,128)}', space=vmem, size = 0x9000, scoped, tag = 'internal scratch']
  %s0 = inlined_call_operand.vmem [shape: f32[2,4,16], index: 0, kind: input, shape index: {}]
  %s1 = inlined_call_operand.vmem [shape: f32[2,8,16], index: 1, kind: input, shape index: {}]
  %s2 = inlined_call_operand.vmem [shape: f32[2,4,1], index: 2, kind: input, shape index: {}]
  %s3 = inlined_call_operand.vmem [shape: f32[4,4], index: 3, kind: input, shape index: {}]
  %s4 = inlined_call_operand.vmem [shape: f32[4,4], index: 4, kind: input, shape index: {}]
  %s5 = inlined_call_operand.vmem [shape: f32[4,8], index: 5, kind: input, shape index: {}]
  %s6 = inlined_call_operand.vmem [shape: f32[4,8], index: 6, kind: input, shape index: {}]
  %s7 = inlined_call_operand.vmem [shape: f32[4,4], index: 7, kind: input, shape index: {}]
  %s8 = inlined_call_operand.vmem [shape: f32[4,4], index: 8, kind: input, shape index: {}]
  %s9 = inlined_call_operand.vmem [shape: f32[4,1], index: 9, kind: input, shape index: {}]
  %s10 = inlined_call_operand.vmem [shape: f32[4,1], index: 10, kind: input, shape index: {}]
  %s11 = inlined_call_operand.vmem [shape: f32[4,1], index: 11, kind: input, shape index: {}]
  %s12 = inlined_call_operand.vmem [shape: f32[4,1], index: 12, kind: input, shape index: {}]
  %s13 = inlined_call_operand.hbm [shape: f32[2,4,16], index: 13, kind: output, shape index: {0}]
  %s14 = inlined_call_operand.hbm [shape: f32[2,4,16], index: 14, kind: output, shape index: {1}]
  %15 = xla_tuple %s13, %s14
  %s16 = sld [smem:[#allocation0]]
  $region93: #{residual_block_forward.1} parent=0
    _
  %s18 = ssub.s32 1, %s16
  %s19 = scalar_select 0, %s18, %s16
  $region1: #{residual_block_forward.1} parent=0
    #allocation2 [shape = 'u8[4096]{0}', space=vmem, size = 0x1000, scoped, tag = 'output window, operand 0']
    #allocation3 [shape = 's32[2]{0}', space=sflag, size = 0x8, scoped, tag = 'scoped memory for residual_block_forward.1']
    #allocation4 [shape = 'u8[4096]{0}', space=vmem, size = 0x1000, scoped, tag = 'output window, operand 1']
    #allocation5 [shape = 's32[2]{0}', space=sflag, size = 0x8, scoped, tag = 'scoped memory for residual_block_forward.1']
    %20 = vsyncpa [#allocation3], 0
    %s21 = scalar_lea.sflag [#allocation3], 1
    %22 = vsyncpa %s21, 0
    %23 = vsyncpa [#allocation5], 0
    %s24 = scalar_lea.sflag [#allocation5], 1
    %25 = vsyncpa %s24, 0
    loop: start=0, step=1, limit=4
    $region2: #{residual_block_forward.1} parent=1 // loop_pre_header
      _
    $region3: #{residual_block_forward.1} parent=1 // loop_header
      %s27 = sphi 0, %s31
      %p28 = scmp.ge.s32.totalorder %s27, 4
      %s34 = sphi 0, %s46
      %s35 = sphi 0, %s42
      %s36 = sphi 0, %s34
      %s37 = sphi 0, %s35
      %s38 = sphi 0, %s36
      %s39 = sphi 0, %s37
      %s51 = sphi 0, %s53
      %s54 = sphi 0, %s51
      %s55 = sphi 0, %s54
      %s71 = sphi 0, %s55
      %s79 = sphi 0, %s81
      %s82 = sphi 0, %s79
      %s83 = sphi 0, %s82
      %s99 = sphi 0, %s83
      %s105 = sphi 0, %s107
      %s108 = sphi 0, %s105
      %s109 = sphi 0, %s108
      %s125 = sphi 0, %s109
      %s129 = sphi 0, %s129
      %s131 = sphi 0, %s129
      %s132 = sphi 0, %s131
      %s146 = sphi 0, %s132
      %s150 = sphi 0, %s150
      %s152 = sphi 0, %s150
      %s153 = sphi 0, %s152
      %s167 = sphi 0, %s153
      %s171 = sphi 0, %s171
      %s173 = sphi 0, %s171
      %s174 = sphi 0, %s173
      %s188 = sphi 0, %s174
      %s192 = sphi 0, %s192
      %s194 = sphi 0, %s192
      %s195 = sphi 0, %s194
      %s209 = sphi 0, %s195
      %s213 = sphi 0, %s213
      %s215 = sphi 0, %s213
      %s216 = sphi 0, %s215
      %s230 = sphi 0, %s216
      %s234 = sphi 0, %s234
      %s236 = sphi 0, %s234
      %s237 = sphi 0, %s236
      %s251 = sphi 0, %s237
      %s255 = sphi 0, %s255
      %s257 = sphi 0, %s255
      %s258 = sphi 0, %s257
      %s272 = sphi 0, %s258
      %s276 = sphi 0, %s276
      %s278 = sphi 0, %s276
      %s279 = sphi 0, %s278
      %s293 = sphi 0, %s279
      %s297 = sphi 0, %s297
      %s299 = sphi 0, %s297
      %s300 = sphi 0, %s299
      %s314 = sphi 0, %s300
      %s318 = sphi 0, %s318
      %s320 = sphi 0, %s318
      %s321 = sphi 0, %s320
      %s335 = sphi 0, %s321
      %s343 = sphi 0, %s345
      %s346 = sphi 0, %s343
      %s347 = sphi 0, %s346
      %s363 = sphi 0, %s347
      %s371 = sphi 0, %s373
      %s374 = sphi 0, %s371
      %s375 = sphi 0, %s374
      %s391 = sphi 0, %s375
    $region4: #{residual_block_forward.1} parent=1 // loop_header_branch
      %30 = sbr.rel (%p28) target = $region8
    $region5: #{residual_block_forward.1} parent=1 // loop_body
      %s32 = ssub.s32 %s27, 1
      %s33 = ssub.s32 %s27, 2
      %s40 = sadd.s32 1, %s35
      %p41 = scmp.ge.s32.totalorder %s40, 1
      %s42 = scalar_select %p41, 0, %s40
      %s43 = sadd.s32 1, %s34
      %s44 = scalar_select %p41, %s43, %s34
      %p45 = scmp.ge.s32.totalorder %s44, 2
      %s46 = scalar_select %p45, 0, %s44
      %s47 = ssub.s32 %s34, %s46
      %s48 = ssub.s32 %s35, %s42
      %s49 = sor.u32 %s47, %s48
      %p50 = scmp.eq.s32.totalorder %s49, 0
      %s52 = sadd.s32 %s51, 1
      %s53 = scalar_select %p50, %s51, %s52
      %p56 = pneg %p50
      %p57 = scmp.eq.s32.totalorder %s27, 1
      %p58 = por %p56, %p57
      %p59 = scmp.ne.s32.totalorder %s51, %s54
      %p60 = scmp.eq.s32.totalorder %s27, 0
      %p61 = por %p59, %p60
      %p62 = scmp.ne.s32.totalorder %s51, %s54
      %p63 = scmp.eq.s32.totalorder %s32, 1
      %p64 = por %p62, %p63
      %p65 = scmp.ne.s32.totalorder %s54, %s55
      %p66 = scmp.eq.s32.totalorder %s32, 0
      %p67 = por %p65, %p66
      %p68 = scmp.ne.s32.totalorder %s54, %s55
      %p69 = scmp.eq.s32.totalorder %s33, 1
      %p70 = por %p68, %p69
      %p72 = scmp.ne.s32.totalorder %s55, %s71
      %p73 = scmp.eq.s32.totalorder %s33, 0
      %p74 = por %p72, %p73
      %s75 = ssub.s32 %s34, %s46
      %s76 = ssub.s32 %s35, %s42
      %s77 = sor.u32 %s75, %s76
      %p78 = scmp.eq.s32.totalorder %s77, 0
      %s80 = sadd.s32 %s79, 1
      %s81 = scalar_select %p78, %s79, %s80
      %p84 = pneg %p78
      %p85 = scmp.eq.s32.totalorder %s27, 1
      %p86 = por %p84, %p85
      %p87 = scmp.ne.s32.totalorder %s79, %s82
      %p88 = scmp.eq.s32.totalorder %s27, 0
      %p89 = por %p87, %p88
      %p90 = scmp.ne.s32.totalorder %s79, %s82
      %p91 = scmp.eq.s32.totalorder %s32, 1
      %p92 = por %p90, %p91
      %p93 = scmp.ne.s32.totalorder %s82, %s83
      %p94 = scmp.eq.s32.totalorder %s32, 0
      %p95 = por %p93, %p94
      %p96 = scmp.ne.s32.totalorder %s82, %s83
      %p97 = scmp.eq.s32.totalorder %s33, 1
      %p98 = por %p96, %p97
      %p100 = scmp.ne.s32.totalorder %s83, %s99
      %p101 = scmp.eq.s32.totalorder %s33, 0
      %p102 = por %p100, %p101
      %s103 = ssub.s32 %s34, %s46
      %p104 = scmp.eq.s32.totalorder %s103, 0
      %s106 = sadd.s32 %s105, 1
      %s107 = scalar_select %p104, %s105, %s106
      %p110 = pneg %p104
      %p111 = scmp.eq.s32.totalorder %s27, 1
      %p112 = por %p110, %p111
      %p113 = scmp.ne.s32.totalorder %s105, %s108
      %p114 = scmp.eq.s32.totalorder %s27, 0
      %p115 = por %p113, %p114
      %p116 = scmp.ne.s32.totalorder %s105, %s108
      %p117 = scmp.eq.s32.totalorder %s32, 1
      %p118 = por %p116, %p117
      %p119 = scmp.ne.s32.totalorder %s108, %s109
      %p120 = scmp.eq.s32.totalorder %s32, 0
      %p121 = por %p119, %p120
      %p122 = scmp.ne.s32.totalorder %s108, %s109
      %p123 = scmp.eq.s32.totalorder %s33, 1
      %p124 = por %p122, %p123
      %p126 = scmp.ne.s32.totalorder %s109, %s125
      %p127 = scmp.eq.s32.totalorder %s33, 0
      %p128 = por %p126, %p127
      %s130 = sadd.s32 %s129, 1
      %p133 = scmp.eq.s32.totalorder %s27, 1
      %p134 = scmp.ne.s32.totalorder %s129, %s131
      %p135 = scmp.eq.s32.totalorder %s27, 0
      %p136 = por %p134, %p135
      %p137 = scmp.ne.s32.totalorder %s129, %s131
      %p138 = scmp.eq.s32.totalorder %s32, 1
      %p139 = por %p137, %p138
      %p140 = scmp.ne.s32.totalorder %s131, %s132
      %p141 = scmp.eq.s32.totalorder %s32, 0
      %p142 = por %p140, %p141
      %p143 = scmp.ne.s32.totalorder %s131, %s132
      %p144 = scmp.eq.s32.totalorder %s33, 1
      %p145 = por %p143, %p144
      %p147 = scmp.ne.s32.totalorder %s132, %s146
      %p148 = scmp.eq.s32.totalorder %s33, 0
      %p149 = por %p147, %p148
      %s151 = sadd.s32 %s150, 1
      %p154 = scmp.eq.s32.totalorder %s27, 1
      %p155 = scmp.ne.s32.totalorder %s150, %s152
      %p156 = scmp.eq.s32.totalorder %s27, 0
      %p157 = por %p155, %p156
      %p158 = scmp.ne.s32.totalorder %s150, %s152
      %p159 = scmp.eq.s32.totalorder %s32, 1
      %p160 = por %p158, %p159
      %p161 = scmp.ne.s32.totalorder %s152, %s153
      %p162 = scmp.eq.s32.totalorder %s32, 0
      %p163 = por %p161, %p162
      %p164 = scmp.ne.s32.totalorder %s152, %s153
      %p165 = scmp.eq.s32.totalorder %s33, 1
      %p166 = por %p164, %p165
      %p168 = scmp.ne.s32.totalorder %s153, %s167
      %p169 = scmp.eq.s32.totalorder %s33, 0
      %p170 = por %p168, %p169
      %s172 = sadd.s32 %s171, 1
      %p175 = scmp.eq.s32.totalorder %s27, 1
      %p176 = scmp.ne.s32.totalorder %s171, %s173
      %p177 = scmp.eq.s32.totalorder %s27, 0
      %p178 = por %p176, %p177
      %p179 = scmp.ne.s32.totalorder %s171, %s173
      %p180 = scmp.eq.s32.totalorder %s32, 1
      %p181 = por %p179, %p180
      %p182 = scmp.ne.s32.totalorder %s173, %s174
      %p183 = scmp.eq.s32.totalorder %s32, 0
      %p184 = por %p182, %p183
      %p185 = scmp.ne.s32.totalorder %s173, %s174
      %p186 = scmp.eq.s32.totalorder %s33, 1
      %p187 = por %p185, %p186
      %p189 = scmp.ne.s32.totalorder %s174, %s188
      %p190 = scmp.eq.s32.totalorder %s33, 0
      %p191 = por %p189, %p190
      %s193 = sadd.s32 %s192, 1
      %p196 = scmp.eq.s32.totalorder %s27, 1
      %p197 = scmp.ne.s32.totalorder %s192, %s194
      %p198 = scmp.eq.s32.totalorder %s27, 0
      %p199 = por %p197, %p198
      %p200 = scmp.ne.s32.totalorder %s192, %s194
      %p201 = scmp.eq.s32.totalorder %s32, 1
      %p202 = por %p200, %p201
      %p203 = scmp.ne.s32.totalorder %s194, %s195
      %p204 = scmp.eq.s32.totalorder %s32, 0
      %p205 = por %p203, %p204
      %p206 = scmp.ne.s32.totalorder %s194, %s195
      %p207 = scmp.eq.s32.totalorder %s33, 1
      %p208 = por %p206, %p207
      %p210 = scmp.ne.s32.totalorder %s195, %s209
      %p211 = scmp.eq.s32.totalorder %s33, 0
      %p212 = por %p210, %p211
      %s214 = sadd.s32 %s213, 1
      %p217 = scmp.eq.s32.totalorder %s27, 1
      %p218 = scmp.ne.s32.totalorder %s213, %s215
      %p219 = scmp.eq.s32.totalorder %s27, 0
      %p220 = por %p218, %p219
      %p221 = scmp.ne.s32.totalorder %s213, %s215
      %p222 = scmp.eq.s32.totalorder %s32, 1
      %p223 = por %p221, %p222
      %p224 = scmp.ne.s32.totalorder %s215, %s216
      %p225 = scmp.eq.s32.totalorder %s32, 0
      %p226 = por %p224, %p225
      %p227 = scmp.ne.s32.totalorder %s215, %s216
      %p228 = scmp.eq.s32.totalorder %s33, 1
      %p229 = por %p227, %p228
      %p231 = scmp.ne.s32.totalorder %s216, %s230
      %p232 = scmp.eq.s32.totalorder %s33, 0
      %p233 = por %p231, %p232
      %s235 = sadd.s32 %s234, 1
      %p238 = scmp.eq.s32.totalorder %s27, 1
      %p239 = scmp.ne.s32.totalorder %s234, %s236
      %p240 = scmp.eq.s32.totalorder %s27, 0
      %p241 = por %p239, %p240
      %p242 = scmp.ne.s32.totalorder %s234, %s236
      %p243 = scmp.eq.s32.totalorder %s32, 1
      %p244 = por %p242, %p243
      %p245 = scmp.ne.s32.totalorder %s236, %s237
      %p246 = scmp.eq.s32.totalorder %s32, 0
      %p247 = por %p245, %p246
      %p248 = scmp.ne.s32.totalorder %s236, %s237
      %p249 = scmp.eq.s32.totalorder %s33, 1
      %p250 = por %p248, %p249
      %p252 = scmp.ne.s32.totalorder %s237, %s251
      %p253 = scmp.eq.s32.totalorder %s33, 0
      %p254 = por %p252, %p253
      %s256 = sadd.s32 %s255, 1
      %p259 = scmp.eq.s32.totalorder %s27, 1
      %p260 = scmp.ne.s32.totalorder %s255, %s257
      %p261 = scmp.eq.s32.totalorder %s27, 0
      %p262 = por %p260, %p261
      %p263 = scmp.ne.s32.totalorder %s255, %s257
      %p264 = scmp.eq.s32.totalorder %s32, 1
      %p265 = por %p263, %p264
      %p266 = scmp.ne.s32.totalorder %s257, %s258
      %p267 = scmp.eq.s32.totalorder %s32, 0
      %p268 = por %p266, %p267
      %p269 = scmp.ne.s32.totalorder %s257, %s258
      %p270 = scmp.eq.s32.totalorder %s33, 1
      %p271 = por %p269, %p270
      %p273 = scmp.ne.s32.totalorder %s258, %s272
      %p274 = scmp.eq.s32.totalorder %s33, 0
      %p275 = por %p273, %p274
      %s277 = sadd.s32 %s276, 1
      %p280 = scmp.eq.s32.totalorder %s27, 1
      %p281 = scmp.ne.s32.totalorder %s276, %s278
      %p282 = scmp.eq.s32.totalorder %s27, 0
      %p283 = por %p281, %p282
      %p284 = scmp.ne.s32.totalorder %s276, %s278
      %p285 = scmp.eq.s32.totalorder %s32, 1
      %p286 = por %p284, %p285
      %p287 = scmp.ne.s32.totalorder %s278, %s279
      %p288 = scmp.eq.s32.totalorder %s32, 0
      %p289 = por %p287, %p288
      %p290 = scmp.ne.s32.totalorder %s278, %s279
      %p291 = scmp.eq.s32.totalorder %s33, 1
      %p292 = por %p290, %p291
      %p294 = scmp.ne.s32.totalorder %s279, %s293
      %p295 = scmp.eq.s32.totalorder %s33, 0
      %p296 = por %p294, %p295
      %s298 = sadd.s32 %s297, 1
      %p301 = scmp.eq.s32.totalorder %s27, 1
      %p302 = scmp.ne.s32.totalorder %s297, %s299
      %p303 = scmp.eq.s32.totalorder %s27, 0
      %p304 = por %p302, %p303
      %p305 = scmp.ne.s32.totalorder %s297, %s299
      %p306 = scmp.eq.s32.totalorder %s32, 1
      %p307 = por %p305, %p306
      %p308 = scmp.ne.s32.totalorder %s299, %s300
      %p309 = scmp.eq.s32.totalorder %s32, 0
      %p310 = por %p308, %p309
      %p311 = scmp.ne.s32.totalorder %s299, %s300
      %p312 = scmp.eq.s32.totalorder %s33, 1
      %p313 = por %p311, %p312
      %p315 = scmp.ne.s32.totalorder %s300, %s314
      %p316 = scmp.eq.s32.totalorder %s33, 0
      %p317 = por %p315, %p316
      %s319 = sadd.s32 %s318, 1
      %p322 = scmp.eq.s32.totalorder %s27, 1
      %p323 = scmp.ne.s32.totalorder %s318, %s320
      %p324 = scmp.eq.s32.totalorder %s27, 0
      %p325 = por %p323, %p324
      %p326 = scmp.ne.s32.totalorder %s318, %s320
      %p327 = scmp.eq.s32.totalorder %s32, 1
      %p328 = por %p326, %p327
      %p329 = scmp.ne.s32.totalorder %s320, %s321
      %p330 = scmp.eq.s32.totalorder %s32, 0
      %p331 = por %p329, %p330
      %p332 = scmp.ne.s32.totalorder %s320, %s321
      %p333 = scmp.eq.s32.totalorder %s33, 1
      %p334 = por %p332, %p333
      %p336 = scmp.ne.s32.totalorder %s321, %s335
      %p337 = scmp.eq.s32.totalorder %s33, 0
      %p338 = por %p336, %p337
      %s339 = ssub.s32 %s34, %s46
      %s340 = ssub.s32 %s35, %s42
      %s341 = sor.u32 %s339, %s340
      %p342 = scmp.eq.s32.totalorder %s341, 0
      %s344 = sadd.s32 %s343, 1
      %s345 = scalar_select %p342, %s343, %s344
      %p348 = pneg %p342
      %p349 = scmp.eq.s32.totalorder %s27, 1
      %p350 = por %p348, %p349
      %p351 = scmp.ne.s32.totalorder %s343, %s346
      %p352 = scmp.eq.s32.totalorder %s27, 0
      %p353 = por %p351, %p352
      %p354 = scmp.ne.s32.totalorder %s343, %s346
      %p355 = scmp.eq.s32.totalorder %s32, 1
      %p356 = por %p354, %p355
      %p357 = scmp.ne.s32.totalorder %s346, %s347
      %p358 = scmp.eq.s32.totalorder %s32, 0
      %p359 = por %p357, %p358
      %p360 = scmp.ne.s32.totalorder %s346, %s347
      %p361 = scmp.eq.s32.totalorder %s33, 1
      %p362 = por %p360, %p361
      %p364 = scmp.ne.s32.totalorder %s347, %s363
      %p365 = scmp.eq.s32.totalorder %s33, 0
      %p366 = por %p364, %p365
      %s367 = ssub.s32 %s34, %s46
      %s368 = ssub.s32 %s35, %s42
      %s369 = sor.u32 %s367, %s368
      %p370 = scmp.eq.s32.totalorder %s369, 0
      %s372 = sadd.s32 %s371, 1
      %s373 = scalar_select %p370, %s371, %s372
      %p376 = pneg %p370
      %p377 = scmp.eq.s32.totalorder %s27, 1
      %p378 = por %p376, %p377
      %p379 = scmp.ne.s32.totalorder %s371, %s374
      %p380 = scmp.eq.s32.totalorder %s27, 0
      %p381 = por %p379, %p380
      %p382 = scmp.ne.s32.totalorder %s371, %s374
      %p383 = scmp.eq.s32.totalorder %s32, 1
      %p384 = por %p382, %p383
      %p385 = scmp.ne.s32.totalorder %s374, %s375
      %p386 = scmp.eq.s32.totalorder %s32, 0
      %p387 = por %p385, %p386
      %p388 = scmp.ne.s32.totalorder %s374, %s375
      %p389 = scmp.eq.s32.totalorder %s33, 1
      %p390 = por %p388, %p389
      %p392 = scmp.ne.s32.totalorder %s375, %s391
      %p393 = scmp.eq.s32.totalorder %s33, 0
      %p394 = por %p392, %p393
      %p395 = scmp.le.s32.totalorder 1, %s27
      %p396 = scmp.lt.s32.totalorder %s27, 3
      %p397 = pnand %p395, %p396
      %p398 = pneg %p397
      // Predicated region
      $region9: #{residual_block_forward.1} parent=5 // pred_check
        _
      $region10: #{residual_block_forward.1} parent=5 // pred_check_branch
        %400 = sbr.rel (%p397) target = $region12
      $region11: #{residual_block_forward.1} parent=5 // pred_region
        %s401 = ssub.s32 %s27, 1
        // Predicated region
        $region13: #{residual_block_forward.1} parent=11 // pred_check
          %p402 = pneg %p142
        $region14: #{residual_block_forward.1} parent=11 // pred_check_branch
          %404 = sbr.rel (%p402) target = $region16
        $region15: #{residual_block_forward.1} parent=11 // pred_region
          _
        $region16: #{residual_block_forward.1} parent=11 // pred_fallthru
          _
        // Predicated region
        $region17: #{residual_block_forward.1} parent=11 // pred_check
          %p405 = pneg %p163
        $region18: #{residual_block_forward.1} parent=11 // pred_check_branch
          %407 = sbr.rel (%p405) target = $region20
        $region19: #{residual_block_forward.1} parent=11 // pred_region
          _
        $region20: #{residual_block_forward.1} parent=11 // pred_fallthru
          _
        // Predicated region
        $region21: #{residual_block_forward.1} parent=11 // pred_check
          %p408 = pneg %p184
        $region22: #{residual_block_forward.1} parent=11 // pred_check_branch
          %410 = sbr.rel (%p408) target = $region24
        $region23: #{residual_block_forward.1} parent=11 // pred_region
          _
        $region24: #{residual_block_forward.1} parent=11 // pred_fallthru
          _
        // Predicated region
        $region25: #{residual_block_forward.1} parent=11 // pred_check
          %p411 = pneg %p205
        $region26: #{residual_block_forward.1} parent=11 // pred_check_branch
          %413 = sbr.rel (%p411) target = $region28
        $region27: #{residual_block_forward.1} parent=11 // pred_region
          _
        $region28: #{residual_block_forward.1} parent=11 // pred_fallthru
          _
        // Predicated region
        $region29: #{residual_block_forward.1} parent=11 // pred_check
          %p414 = pneg %p226
        $region30: #{residual_block_forward.1} parent=11 // pred_check_branch
          %416 = sbr.rel (%p414) target = $region32
        $region31: #{residual_block_forward.1} parent=11 // pred_region
          _
        $region32: #{residual_block_forward.1} parent=11 // pred_fallthru
          _
        // Predicated region
        $region33: #{residual_block_forward.1} parent=11 // pred_check
          %p417 = pneg %p247
        $region34: #{residual_block_forward.1} parent=11 // pred_check_branch
          %419 = sbr.rel (%p417) target = $region36
        $region35: #{residual_block_forward.1} parent=11 // pred_region
          _
        $region36: #{residual_block_forward.1} parent=11 // pred_fallthru
          _
        // Predicated region
        $region37: #{residual_block_forward.1} parent=11 // pred_check
          %p420 = pneg %p268
        $region38: #{residual_block_forward.1} parent=11 // pred_check_branch
          %422 = sbr.rel (%p420) target = $region40
        $region39: #{residual_block_forward.1} parent=11 // pred_region
          _
        $region40: #{residual_block_forward.1} parent=11 // pred_fallthru
          _
        // Predicated region
        $region41: #{residual_block_forward.1} parent=11 // pred_check
          %p423 = pneg %p289
        $region42: #{residual_block_forward.1} parent=11 // pred_check_branch
          %425 = sbr.rel (%p423) target = $region44
        $region43: #{residual_block_forward.1} parent=11 // pred_region
          _
        $region44: #{residual_block_forward.1} parent=11 // pred_fallthru
          _
        // Predicated region
        $region45: #{residual_block_forward.1} parent=11 // pred_check
          %p426 = pneg %p310
        $region46: #{residual_block_forward.1} parent=11 // pred_check_branch
          %428 = sbr.rel (%p426) target = $region48
        $region47: #{residual_block_forward.1} parent=11 // pred_region
          _
        $region48: #{residual_block_forward.1} parent=11 // pred_fallthru
          _
        // Predicated region
        $region49: #{residual_block_forward.1} parent=11 // pred_check
          %p429 = pneg %p331
        $region50: #{residual_block_forward.1} parent=11 // pred_check_branch
          %431 = sbr.rel (%p429) target = $region52
        $region51: #{residual_block_forward.1} parent=11 // pred_region
          _
        $region52: #{residual_block_forward.1} parent=11 // pred_fallthru
          _
      $region12: #{residual_block_forward.1} parent=5 // pred_fallthru
        _
      %p432 = scmp.lt.s32.totalorder %s27, 2
      // Predicated region
      $region53: #{residual_block_forward.1} parent=5 // pred_check
        %p433 = pneg %p432
      $region54: #{residual_block_forward.1} parent=5 // pred_check_branch
        %435 = sbr.rel (%p433) target = $region56
      $region55: #{residual_block_forward.1} parent=5 // pred_region
        // Predicated region
        $region57: #{residual_block_forward.1} parent=55 // pred_check
          %p436 = pneg %p61
        $region58: #{residual_block_forward.1} parent=55 // pred_check_branch
          %438 = sbr.rel (%p436) target = $region60
        $region59: #{residual_block_forward.1} parent=55 // pred_region
          %p439 = scmp.lt.s32.totalorder %s34, 1
          %s440 = scalar_select %p439, %s34, 1
          %p441 = scmp.lt.s32.totalorder %s35, 0
          %s442 = scalar_select %p441, %s35, 0
          %s443 = sadd.s32 %s442, %s440
          %s444 = smul.addr %s443, 4
          %s445 = scalar_lea.vmem %s0, %s444
        $region60: #{residual_block_forward.1} parent=55 // pred_fallthru
          _
        // Predicated region
        $region61: #{residual_block_forward.1} parent=55 // pred_check
          %p446 = pneg %p89
        $region62: #{residual_block_forward.1} parent=55 // pred_check_branch
          %448 = sbr.rel (%p446) target = $region64
        $region63: #{residual_block_forward.1} parent=55 // pred_region
          %p449 = scmp.lt.s32.totalorder %s34, 1
          %s450 = scalar_select %p449, %s34, 1
          %p451 = scmp.lt.s32.totalorder %s35, 0
          %s452 = scalar_select %p451, %s35, 0
          %s453 = sadd.s32 %s452, %s450
          %s454 = smul.addr %s453, 8
          %s455 = scalar_lea.vmem %s1, %s454
        $region64: #{residual_block_forward.1} parent=55 // pred_fallthru
          _
        // Predicated region
        $region65: #{residual_block_forward.1} parent=55 // pred_check
          %p456 = pneg %p115
        $region66: #{residual_block_forward.1} parent=55 // pred_check_branch
          %458 = sbr.rel (%p456) target = $region68
        $region67: #{residual_block_forward.1} parent=55 // pred_region
          %p459 = scmp.lt.s32.totalorder %s34, 1
          %s460 = scalar_select %p459, %s34, 1
          %s461 = smul.addr %s460, 4
          %s462 = scalar_lea.vmem %s2, %s461
        $region68: #{residual_block_forward.1} parent=55 // pred_fallthru
          _
      $region56: #{residual_block_forward.1} parent=5 // pred_fallthru
        _
      %p463 = scmp.le.s32.totalorder 1, %s27
      %p464 = scmp.lt.s32.totalorder %s27, 3
      %p465 = pnand %p463, %p464
      %p466 = pneg %p465
      // Predicated region
      $region69: #{residual_block_forward.1} parent=5 // pred_check
        _
      $region70: #{residual_block_forward.1} parent=5 // pred_check_branch
        %468 = sbr.rel (%p465) target = $region72
      $region71: #{residual_block_forward.1} parent=5 // pred_region
        %s469 = ssub.s32 %s27, 1
        %p470 = scmp.lt.s32.totalorder %s36, 1
        %s471 = scalar_select %p470, %s36, 1
        %p472 = scmp.lt.s32.totalorder %s37, 0
        %s473 = scalar_select %p472, %s37, 0
        %s474 = sadd.s32 %s473, %s471
        %s475 = smul.addr %s474, 4
        %s476 = scalar_lea.vmem %s0, %s475
        %p477 = pneg %p67
        %p478 = pneg %p64
        %p479 = scmp.lt.s32.totalorder %s36, 1
        %s480 = scalar_select %p479, %s36, 1
        %p481 = scmp.lt.s32.totalorder %s37, 0
        %s482 = scalar_select %p481, %s37, 0
        %s483 = sadd.s32 %s482, %s480
        %s484 = smul.addr %s483, 8
        %s485 = scalar_lea.vmem %s1, %s484
        %p486 = pneg %p95
        %p487 = pneg %p92
        %p488 = scmp.lt.s32.totalorder %s36, 1
        %s489 = scalar_select %p488, %s36, 1
        %s490 = smul.addr %s489, 4
        %s491 = scalar_lea.vmem %s2, %s490
        %p492 = pneg %p121
        %p493 = pneg %p118
        %p494 = pneg %p142
        %p495 = pneg %p139
        %p496 = pneg %p163
        %p497 = pneg %p160
        %p498 = pneg %p184
        %p499 = pneg %p181
        %p500 = pneg %p205
        %p501 = pneg %p202
        %p502 = pneg %p226
        %p503 = pneg %p223
        %p504 = pneg %p247
        %p505 = pneg %p244
        %p506 = pneg %p268
        %p507 = pneg %p265
        %p508 = pneg %p289
        %p509 = pneg %p286
        %p510 = pneg %p310
        %p511 = pneg %p307
        %p512 = pneg %p331
        %p513 = pneg %p328
        %p514 = pneg %p359
        %p515 = pneg %p356
        %s516 = sand.u32 %s346, 1
        %s517 = scalar_lea.sflag [#allocation3], %s516
        %s518 = sand.u32 %s346, 1
        %s519 = smul.addr %s518, 4
        %s520 = scalar_lea.vmem [#allocation2], %s519
        %p521 = pneg %p387
        %p522 = pneg %p384
        %s523 = sand.u32 %s374, 1
        %s524 = scalar_lea.sflag [#allocation5], %s523
        %s525 = sand.u32 %s374, 1
        %s526 = smul.addr %s525, 4
        %s527 = scalar_lea.vmem [#allocation4], %s526
        %p528 = scmp.lt.s32.totalorder %s36, 1
        %s529 = scalar_select %p528, %s36, 1
        %p530 = scmp.lt.s32.totalorder %s37, 0
        %s531 = scalar_select %p530, %s37, 0
        %s532 = sadd.s32 %s531, %s529
        %s533 = smul.addr %s532, 4
        %s534 = scalar_lea.vmem %s0, %s533
        %p535 = scmp.lt.s32.totalorder %s36, 1
        %s536 = scalar_select %p535, %s36, 1
        %p537 = scmp.lt.s32.totalorder %s37, 0
        %s538 = scalar_select %p537, %s37, 0
        %s539 = sadd.s32 %s538, %s536
        %s540 = smul.addr %s539, 8
        %s541 = scalar_lea.vmem %s1, %s540
        %p542 = scmp.lt.s32.totalorder %s36, 1
        %s543 = scalar_select %p542, %s36, 1
        %s544 = smul.addr %s543, 4
        %s545 = scalar_lea.vmem %s2, %s544
        %v546 = vld [vmem:[%s534] sm:$0xf]
        %v547 = vld [vmem:[%s541] sm:$0xff]
        %v548 = vld [vmem:[%s545] sm:$0xf]
        %550 = vset.pattern.permute.xlu0 0
        %551 = vperm.xlu0 %550, %v548
        %v552 = vpop.permute.xlu0 %551
        %v554 = vadd.f32 %v546, %v552
        %v555 = vld [vmem:[%s3] sm:$0xf]
        %v556 = vld [vmem:[%s5] sm:$0xf]
        %vm557 = vcmask 64512
        %v559 = vsel %vm557, %v556, 0
        %561 = vmatpush.msra.mxu0 0.0
        %562 = vmatpush.msra.mxu0 0.0
        %563 = vmatpush.msra.mxu0 0.0
        %564 = vmatpush.msra.mxu0 0.0
        %565 = vmatpush.msra.mxu0 0.0
        %566 = vmatpush.msra.mxu0 0.0
        %567 = vmatpush.msra.mxu0 0.0
        %568 = vmatpush.msra.mxu0 0.0
        %569 = vmatpush.msra.mxu0 0.0
        %570 = vmatpush.msra.mxu0 0.0
        %571 = vmatpush.msra.mxu0 0.0
        %572 = vmatpush.msra.mxu0 0.0
        %573 = vmatpush.msra.mxu0 0.0
        %574 = vmatpush.msra.mxu0 0.0
        %575 = vmatpush.msra.mxu0 0.0
        %576 = vmatpush.msra.mxu0 %v547
        %577 = vmatmul.f32.gmra.mxu0 %v559
        %v578 = vpop.f32.mrf.mxu0
        %v579 = vadd.f32 0.0, %v578
        %580 = vdwg.mxu0
        %vm581 = vcmask 31744
        %v583 = vsel %vm581, %v555, 0
        %vm585 = vcmask 1043456
        %v587 = vsel %vm585, %v554, 0
        %589 = vmatpush.msra.mxu0 0.0
        %590 = vmatpush.msra.mxu0 0.0
        %591 = vmatpush.msra.mxu0 0.0
        %592 = vmatpush.msra.mxu0 0.0
        %593 = vmatpush.msra.mxu0 0.0
        %594 = vmatpush.msra.mxu0 0.0
        %595 = vmatpush.msra.mxu0 0.0
        %596 = vmatpush.msra.mxu0 0.0
        %597 = vmatpush.msra.mxu0 0.0
        %598 = vmatpush.msra.mxu0 0.0
        %599 = vmatpush.msra.mxu0 0.0
        %600 = vmatpush.msra.mxu0 0.0
        %601 = vmatpush.msra.mxu0 0.0
        %602 = vmatpush.msra.mxu0 0.0
        %603 = vmatpush.msra.mxu0 0.0
        %604 = vmatpush.msra.mxu0 %v587
        %605 = vmatmul.f32.gmra.mxu0 %v583
        %v606 = vpop.f32.mrf.mxu0
        %v607 = vadd.f32 %v579, %v606
        %608 = vdwg.mxu0
        %v609 = vld [vmem:[%s9] sm:$0xf]
        %611 = vset.pattern.permute.xlu0 0
        %612 = vperm.xlu0 %611, %v609
        %v613 = vpop.permute.xlu0 %612
        %v615 = vadd.f32 %v607, %v613
        %v616 = vld [vmem:[%s4] sm:$0xf]
        %v617 = vld [vmem:[%s6] sm:$0xf]
        %v619 = vsel %vm557, %v617, 0
        %621 = vmatpush.msra.mxu0 0.0
        %622 = vmatpush.msra.mxu0 0.0
        %623 = vmatpush.msra.mxu0 0.0
        %624 = vmatpush.msra.mxu0 0.0
        %625 = vmatpush.msra.mxu0 0.0
        %626 = vmatpush.msra.mxu0 0.0
        %627 = vmatpush.msra.mxu0 0.0
        %628 = vmatpush.msra.mxu0 0.0
        %629 = vmatpush.msra.mxu0 0.0
        %630 = vmatpush.msra.mxu0 0.0
        %631 = vmatpush.msra.mxu0 0.0
        %632 = vmatpush.msra.mxu0 0.0
        %633 = vmatpush.msra.mxu0 0.0
        %634 = vmatpush.msra.mxu0 0.0
        %635 = vmatpush.msra.mxu0 0.0
        %636 = vmatpush.msra.mxu0 %v547
        %637 = vmatmul.f32.gmra.mxu0 %v619
        %v638 = vpop.f32.mrf.mxu0
        %v639 = vadd.f32 0.0, %v638
        %640 = vdwg.mxu0
        %v642 = vsel %vm581, %v616, 0
        %644 = vmatpush.msra.mxu0 0.0
        %645 = vmatpush.msra.mxu0 0.0
        %646 = vmatpush.msra.mxu0 0.0
        %647 = vmatpush.msra.mxu0 0.0
        %648 = vmatpush.msra.mxu0 0.0
        %649 = vmatpush.msra.mxu0 0.0
        %650 = vmatpush.msra.mxu0 0.0
        %651 = vmatpush.msra.mxu0 0.0
        %652 = vmatpush.msra.mxu0 0.0
        %653 = vmatpush.msra.mxu0 0.0
        %654 = vmatpush.msra.mxu0 0.0
        %655 = vmatpush.msra.mxu0 0.0
        %656 = vmatpush.msra.mxu0 0.0
        %657 = vmatpush.msra.mxu0 0.0
        %658 = vmatpush.msra.mxu0 0.0
        %659 = vmatpush.msra.mxu0 %v587
        %660 = vmatmul.f32.gmra.mxu0 %v642
        %v661 = vpop.f32.mrf.mxu0
        %v662 = vadd.f32 %v639, %v661
        %663 = vdwg.mxu0
        %v664 = vld [vmem:[%s10] sm:$0xf]
        %666 = vset.pattern.permute.xlu0 0
        %667 = vperm.xlu0 %666, %v664
        %v668 = vpop.permute.xlu0 %667
        %v670 = vadd.f32 %v662, %v668
        %v671 = vxor.u32 %v615, 2147483648
        %v672 = vmul.f32 %v671, 1.442695
        %v673 = vpow.pop %v672
        %v674 = vadd.f32 %v673, 1.0
        %v675 = vrcp.pop %v674
        %v676 = vmul.f32 %v674, %v675
        %v677 = vsub.f32 1.0, %v676
        %v678 = vmul.f32 %v675, %v677
        %v679 = vadd.f32 %v675, %v678
        %vm680 = vweird.f32 %v674
        %vm681 = vweird.f32 %v675
        %vm682 = vmor %vm680, %vm681
        %v683 = vsel %vm682, %v675, %v679
        %v684 = vand.u32 2147483647, %v674
        %vm685 = vcmp.eq.f32.partialorder %v684, 8.507059e+37
        %v686 = vand.u32 %v674, 2147483648
        %v687 = vor.u32 1.1754944e-38, %v686
        %v688 = vsel %vm685, %v687, %v683
        %v689 = vmul.f32 1.0, %v688
        %v690 = vtanh.pop %v670
        %v691 = vmul.f32 %v689, %v690
        %v692 = vld [vmem:[%s7] sm:$0xf]
        %v693 = vld [vmem:[%s11] sm:$0xf]
        %695 = vset.pattern.permute.xlu0 0
        %696 = vperm.xlu0 %695, %v693
        %v697 = vpop.permute.xlu0 %696
        %v700 = vsel %vm581, %v692, 0
        %v703 = vsel %vm585, %v691, 0
        %705 = vmatpush.msra.mxu0 0.0
        %706 = vmatpush.msra.mxu0 0.0
        %707 = vmatpush.msra.mxu0 0.0
        %708 = vmatpush.msra.mxu0 0.0
        %709 = vmatpush.msra.mxu0 0.0
        %710 = vmatpush.msra.mxu0 0.0
        %711 = vmatpush.msra.mxu0 0.0
        %712 = vmatpush.msra.mxu0 0.0
        %713 = vmatpush.msra.mxu0 0.0
        %714 = vmatpush.msra.mxu0 0.0
        %715 = vmatpush.msra.mxu0 0.0
        %716 = vmatpush.msra.mxu0 0.0
        %717 = vmatpush.msra.mxu0 0.0
        %718 = vmatpush.msra.mxu0 0.0
        %719 = vmatpush.msra.mxu0 0.0
        %720 = vmatpush.msra.mxu0 %v703
        %721 = vmatmul.f32.gmra.mxu0 %v700
        %v722 = vpop.f32.mrf.mxu0
        %v723 = vadd.f32 %v697, %v722
        %724 = vdwg.mxu0
        %v725 = vld [vmem:[%s8] sm:$0xf]
        %v726 = vld [vmem:[%s12] sm:$0xf]
        %728 = vset.pattern.permute.xlu0 0
        %729 = vperm.xlu0 %728, %v726
        %v730 = vpop.permute.xlu0 %729
        %v733 = vsel %vm581, %v725, 0
        %735 = vmatpush.msra.mxu0 0.0
        %736 = vmatpush.msra.mxu0 0.0
        %737 = vmatpush.msra.mxu0 0.0
        %738 = vmatpush.msra.mxu0 0.0
        %739 = vmatpush.msra.mxu0 0.0
        %740 = vmatpush.msra.mxu0 0.0
        %741 = vmatpush.msra.mxu0 0.0
        %742 = vmatpush.msra.mxu0 0.0
        %743 = vmatpush.msra.mxu0 0.0
        %744 = vmatpush.msra.mxu0 0.0
        %745 = vmatpush.msra.mxu0 0.0
        %746 = vmatpush.msra.mxu0 0.0
        %747 = vmatpush.msra.mxu0 0.0
        %748 = vmatpush.msra.mxu0 0.0
        %749 = vmatpush.msra.mxu0 0.0
        %750 = vmatpush.msra.mxu0 %v703
        %751 = vmatmul.f32.gmra.mxu0 %v733
        %v752 = vpop.f32.mrf.mxu0
        %v753 = vadd.f32 %v730, %v752
        %754 = vdwg.mxu0
        %v755 = vadd.f32 %v546, %v723
        %v756 = vmul.f32 %v755, 0.70710677
        %vm757 = vcmask 125952
        %758 = vst.msk [vmem:[%s520] sm:$0xf] %vm757, %v756
        %759 = vst.msk [vmem:[%s527] sm:$0xf] %vm757, %v753
        %s760 = sand.u32 %s346, 1
        %s761 = scalar_lea.sflag [#allocation3], %s760
        %s762 = sand.u32 %s346, 1
        %s763 = smul.addr %s762, 4
        %s764 = scalar_lea.vmem [#allocation2], %s763
        %s765 = sand.u32 %s374, 1
        %s766 = scalar_lea.sflag [#allocation5], %s765
        %s767 = sand.u32 %s374, 1
        %s768 = smul.addr %s767, 4
        %s769 = scalar_lea.vmem [#allocation4], %s768
        // Predicated region
        $region73: #{residual_block_forward.1} parent=71 // pred_check
          %p770 = pneg %p356
        $region74: #{residual_block_forward.1} parent=71 // pred_check_branch
          %772 = sbr.rel (%p770) target = $region76
        $region75: #{residual_block_forward.1} parent=71 // pred_region
          %774 = vsyncadd %s761, 0
          %s775 = sadd.s32 %s37, %s36
          %s776 = smul.addr %s775, 4
          %s777 = scalar_lea.hbm %s13, %s776
          %s779 = sshll.u32 %s764, 4
          %s780 = int_to_ptr.vmem [resolvable:$true] %s779
          %s781 = sshll.u32 %s777, 4
          %s782 = int_to_ptr.hbm [resolvable:$true] %s781
          %784 = dma.vmem_to_hbm [thread:$0]  %s780, 64, %s782, %s761
        $region76: #{residual_block_forward.1} parent=71 // pred_fallthru
          _
        // Predicated region
        $region77: #{residual_block_forward.1} parent=71 // pred_check
          %p785 = pneg %p384
        $region78: #{residual_block_forward.1} parent=71 // pred_check_branch
          %787 = sbr.rel (%p785) target = $region80
        $region79: #{residual_block_forward.1} parent=71 // pred_region
          %789 = vsyncadd %s766, 0
          %s790 = sadd.s32 %s37, %s36
          %s791 = smul.addr %s790, 4
          %s792 = scalar_lea.hbm %s14, %s791
          %s794 = sshll.u32 %s769, 4
          %s795 = int_to_ptr.vmem [resolvable:$true] %s794
          %s796 = sshll.u32 %s792, 4
          %s797 = int_to_ptr.hbm [resolvable:$true] %s796
          %799 = dma.vmem_to_hbm [thread:$0]  %s795, 64, %s797, %s766
        $region80: #{residual_block_forward.1} parent=71 // pred_fallthru
          _
      $region72: #{residual_block_forward.1} parent=5 // pred_fallthru
        _
      %p800 = scmp.le.s32.totalorder 2, %s27
      // Predicated region
      $region81: #{residual_block_forward.1} parent=5 // pred_check
        %p801 = pneg %p800
      $region82: #{residual_block_forward.1} parent=5 // pred_check_branch
        %803 = sbr.rel (%p801) target = $region84
      $region83: #{residual_block_forward.1} parent=5 // pred_region
        %s804 = ssub.s32 %s27, 2
        // Predicated region
        $region85: #{residual_block_forward.1} parent=83 // pred_check
          %p805 = pneg %p362
        $region86: #{residual_block_forward.1} parent=83 // pred_check_branch
          %807 = sbr.rel (%p805) target = $region88
        $region87: #{residual_block_forward.1} parent=83 // pred_region
          %s808 = sand.u32 %s347, 1
          %s809 = scalar_lea.sflag [#allocation3], %s808
          %s810 = sand.u32 %s347, 1
          %s811 = smul.addr %s810, 4
          %s812 = scalar_lea.vmem [#allocation2], %s811
          %814 = dma.done %s809, 64
        $region88: #{residual_block_forward.1} parent=83 // pred_fallthru
          _
        // Predicated region
        $region89: #{residual_block_forward.1} parent=83 // pred_check
          %p815 = pneg %p390
        $region90: #{residual_block_forward.1} parent=83 // pred_check_branch
          %817 = sbr.rel (%p815) target = $region92
        $region91: #{residual_block_forward.1} parent=83 // pred_region
          %s818 = sand.u32 %s375, 1
          %s819 = scalar_lea.sflag [#allocation5], %s818
          %s820 = sand.u32 %s375, 1
          %s821 = smul.addr %s820, 4
          %s822 = scalar_lea.vmem [#allocation4], %s821
          %824 = dma.done %s819, 64
        $region92: #{residual_block_forward.1} parent=83 // pred_fallthru
          _
      $region84: #{residual_block_forward.1} parent=5 // pred_fallthru
        _
    $region6: #{residual_block_forward.1} parent=1 // loop_footer
      %s31 = sadd.s32 1, %s27
    $region7: #{residual_block_forward.1} parent=1 // loop_footer_branch
      %26 = sbr.rel target = $region3
    $region8: #{residual_block_forward.1} parent=1 // loop_exit
      _
    %825 = vsyncpa [#allocation3], 1
    %s826 = scalar_lea.sflag [#allocation3], 1
    %827 = vsyncpa %s826, 1
    %828 = vsyncpa [#allocation5], 1
    %s829 = scalar_lea.sflag [#allocation5], 1
    %830 = vsyncpa %s829, 1

</llo_original>
